<compile_context>
chip_gen: v7x
topology: tpu7x:2x2x1
jax: 0.10.0
libtpu: 0.0.40
codegen_flags: <defaults>
</compile_context>

<pallas_src>
import jax
import jax.numpy as jnp
from jax.experimental import pallas as pl
from jax.experimental.pallas import tpu as pltpu

LANES = 128  # lane width; HW is reshaped to (rows, LANES)


def _vmem_capacity_bytes():
    try:
        info = pltpu.get_tpu_info()
        cap = getattr(info, "vmem_capacity_bytes", None)
        if cap:
            return int(cap)
    except Exception:
        pass
    return 64 * 1024 * 1024  # conservative default: v7x per-TensorCore VMEM


def _per_row_live_bytes(n_classes, in_itemsize, lab_itemsize):
    # Per row of LANES pixels: double-buffered logits + label input blocks plus
    # ~(2C + 6) f32 working slabs (x, e, m, s, p, select temps) live in the body.
    return LANES * (2 * (n_classes * in_itemsize + lab_itemsize)
                    + (2 * n_classes + 6) * 4)


def _pick_rows_per_tile(n_classes, in_itemsize, lab_itemsize, cap):
    per_row = _per_row_live_bytes(n_classes, in_itemsize, lab_itemsize)
    budget = max(8 * 1024 * 1024,
                 min(int(cap * 0.45), cap - 24 * 1024 * 1024))
    rows = max(8, (budget // per_row) // 8 * 8)
    # ~512K pixels/step on 128 MiB parts, ~256K on 64 MiB parts: amortizes the
    # ~0.35 us per-step overhead to <10% even on v7x's 3.2 TB/s HBM.
    rows = min(rows, 4096 if cap >= 96 * 1024 * 1024 else 2048)
    return rows


def _make_kernel(n_classes, hw, rows_blk, n_row_tiles, tiles_per_half, split):
    has_phantom = split * tiles_per_half > n_row_tiles
    last_tile = n_row_tiles - 1
    tail_ragged = (n_row_tiles * rows_blk * LANES) != hw
    h_last, j_last = divmod(last_tile, tiles_per_half)

    def kernel(x_ref, t_ref, acc_ref):
        h = pl.program_id(1)
        j = pl.program_id(2)

        # Output block is resident across the row-tile (j) axis -> accumulator.
        @pl.when(j == 0)
        def _init():
            acc_ref[...] = jnp.zeros_like(acc_ref)

        # Labels widened in VMEM only (HBM traffic stays at the native width).
        labels = t_ref[0].astype(jnp.int32)                       # (R, 128)

        # Per-class dense (R, 128) slabs: the class softmax is an unrolled loop
        # of plain VPU elementwise max/sub/add; no cross-sublane XLU reduce.
        xs = [x_ref[0, c].astype(jnp.float32) for c in range(n_classes)]
        m = xs[0]
        for c in range(1, n_classes):
            m = jnp.maximum(m, xs[c])
        es = [jnp.exp(xs[c] - m) for c in range(n_classes)]
        s = es[0]
        for c in range(1, n_classes):
            s = s + es[c]
        inv = pl.reciprocal(s)          # exact; approx=True breaks 1e-5 budget

        def accumulate(valid):
            for c in range(n_classes):
                p_c = es[c] * inv
                hit = labels == c                    # scalar-constant compare
                if valid is not None:
                    # Select-mask (not multiply) so garbage/NaN tail lanes and
                    # padded labels can never leak into the sums.
                    p_c = jnp.where(valid, p_c, 0.0)
                    hit = jnp.logical_and(hit, valid)
                tp = jnp.sum(jnp.where(hit, p_c, 0.0), axis=0, keepdims=True)
                ps = jnp.sum(p_c, axis=0, keepdims=True)
                cn = jnp.sum(jnp.where(hit, 1.0, 0.0), axis=0, keepdims=True)
                r0, r1, r2 = c, n_classes + c, 2 * n_classes + c
                acc_ref[0, 0, r0:r0 + 1, :] = acc_ref[0, 0, r0:r0 + 1, :] + tp
                acc_ref[0, 0, r1:r1 + 1, :] = acc_ref[0, 0, r1:r1 + 1, :] + ps
                acc_ref[0, 0, r2:r2 + 1, :] = acc_ref[0, 0, r2:r2 + 1, :] + cn

        is_tail = jnp.logical_and(h == h_last, j == j_last)
        conds = []
        if tail_ragged:
            conds.append(jnp.logical_not(is_tail))
        if has_phantom:
            conds.append(jnp.logical_not(
                jnp.logical_and(h == split - 1, j == tiles_per_half - 1)))

        if conds:
            hot = conds[0]
            for cnd in conds[1:]:
                hot = jnp.logical_and(hot, cnd)

            @pl.when(hot)
            def _full():
                accumulate(None)

            if tail_ragged:
                @pl.when(is_tail)
                def _tail():
                    # Only the final real tile contains invalid pixels; the mask
                    # work stays off the hot path of every other tile.
                    row = jax.lax.broadcasted_iota(
                        jnp.int32, (rows_blk, LANES), 0)
                    lane = jax.lax.broadcasted_iota(
                        jnp.int32, (rows_blk, LANES), 1)
                    flat = (last_tile * rows_blk + row) * LANES + lane
                    accumulate(flat < hw)
            # Phantom tile (odd tile count with the 2-way split): contributes
            # nothing; its index map is clamped so the DMA stays in bounds.
        else:
            accumulate(None)

    return kernel


def tversky_loss(inputs, target, n_classes, alpha=0.7, rows_per_tile=None):
    """inputs: (N, C, H, W) float logits (NCHW like PyTorch, native dtype OK).
       target: (N, H, W) integer class labels (native int dtype, no upcast).
       Returns scalar float32 loss == TverskyLoss.forward(softmax=True)."""
    N, C, H, W = inputs.shape
    assert C == n_classes
    HW = H * W
    hw_pad = -(-HW // LANES) * LANES

    # Free reshapes of contiguous NCHW; pad only when H*W % 128 != 0 (padded
    # pixels are select-masked inside the kernel, so pad values are irrelevant).
    x = inputs.reshape(N, C, HW)
    t = target.reshape(N, HW)
    if hw_pad != HW:
        x = jnp.pad(x, ((0, 0), (0, 0), (0, hw_pad - HW)))
        t = jnp.pad(t, ((0, 0), (0, hw_pad - HW)))
    n_rows = hw_pad // LANES
    x = x.reshape(N, C, n_rows, LANES)
    t = t.reshape(N, n_rows, LANES)

    in_itemsize = jnp.dtype(inputs.dtype).itemsize
    lab_itemsize = jnp.dtype(target.dtype).itemsize
    cap = _vmem_capacity_bytes()

    if rows_per_tile is None:
        rows_per_tile = _pick_rows_per_tile(C, in_itemsize, lab_itemsize, cap)
    rows_blk = min(int(rows_per_tile), n_rows)
    if rows_blk < n_rows:
        rows_blk = max(8, (rows_blk // 8) * 8)
    n_row_tiles = -(-n_rows // rows_blk)

    # Two-way split of the row-tile axis so v7x's two TensorCores both work
    # even when N == 1.  Harmless (extra size-2 loop) on single-core chips.
    split = 2 if n_row_tiles >= 2 else 1
    tiles_per_half = -(-n_row_tiles // split)
    has_phantom = split * tiles_per_half > n_row_tiles

    def row_block(h, j):
        rb = h * tiles_per_half + j
        if has_phantom:
            rb = jnp.minimum(rb, n_row_tiles - 1)   # keep the one phantom DMA in bounds
        return rb

    kernel = _make_kernel(C, HW, rows_blk, n_row_tiles, tiles_per_half, split)

    vmem_limit = int(min(
        cap - 8 * 1024 * 1024,
        max(32 * 1024 * 1024,
            rows_blk * _per_row_live_bytes(C, in_itemsize, lab_itemsize)
            + 16 * 1024 * 1024)))

    partials = pl.pallas_call(
        kernel,
        out_shape=jax.ShapeDtypeStruct((N, split, 3 * C, LANES), jnp.float32),
        grid_spec=pltpu.PrefetchScalarGridSpec(
            num_scalar_prefetch=0,
            grid=(N, split, tiles_per_half),
            in_specs=[
                pl.BlockSpec((1, C, rows_blk, LANES),
                             lambda n, h, j: (n, 0, row_block(h, j), 0)),
                pl.BlockSpec((1, rows_blk, LANES),
                             lambda n, h, j: (n, row_block(h, j), 0)),
            ],
            out_specs=pl.BlockSpec((1, 1, 3 * C, LANES),
                                   lambda n, h, j: (n, h, 0, 0)),
        ),
        compiler_params=pltpu.CompilerParams(
            dimension_semantics=("parallel", "parallel", "arbitrary"),
            vmem_limit_bytes=vmem_limit,
        ),
    )(x, t)

    # Tiny finalize in plain JAX: cross-lane/core/batch reduce + Tversky formula.
    sums = jnp.sum(partials, axis=(0, 1, 3))         # (3*C,)
    TP = sums[:C]
    P = sums[C:2 * C]
    CNT = sums[2 * C:]
    alpha = jnp.float32(alpha)
    beta = 1.0 - alpha
    FP = P - TP
    FN = CNT - TP
    smooth = 1.0
    loss_c = 1.0 - (TP + smooth) / (TP + alpha * FP + beta * FN + smooth)
    return jnp.sum(loss_c) / n_classes


def tversky_loss_ref(inputs, target, n_classes, alpha=0.7):
    """Pure-JAX reference mirroring the PyTorch module (softmax=True)."""
    beta = 1.0 - alpha
    p = jax.nn.softmax(inputs.astype(jnp.float32), axis=1)
    t = jax.nn.one_hot(target, n_classes, axis=1, dtype=jnp.float32)
    loss = 0.0
    for i in range(n_classes):
        TP = jnp.sum(p[:, i] * t[:, i])
        FP = jnp.sum((1.0 - t[:, i]) * p[:, i])
        FN = jnp.sum(t[:, i] * (1.0 - p[:, i]))
        loss += 1.0 - (TP + 1.0) / (TP + alpha * FP + beta * FN + 1.0)
    return loss / n_classes


if __name__ == "__main__":
    n_classes = 4
    alpha = 0.7

    def check(key, shape_nhw, **kw):
        N, H, W = shape_nhw
        kx, kt = jax.random.split(key)
        xv = jax.random.normal(kx, (N, n_classes, H, W), dtype=jnp.float32)
        yv = jax.random.randint(kt, (N, H, W), 0, n_classes, dtype=jnp.int32)
        got = jax.block_until_ready(tversky_loss(xv, yv, n_classes, alpha, **kw))
        want = jax.block_until_ready(tversky_loss_ref(xv, yv, n_classes, alpha))
        assert jnp.allclose(got, want, atol=1e-5, rtol=1e-5), (shape_nhw, got, want)

    k1, k2, k3 = jax.random.split(jax.random.PRNGKey(0), 3)

    # 1) Small aligned case: one tile per batch element, no masking anywhere.
    check(k1, (2, 16, 16))
    # 2) Multi-tile + two-way core split + ragged last row-tile + phantom tile.
    check(k2, (1, 64, 80), rows_per_tile=16)
    # 3) H*W not a multiple of 128: wrapper pad + in-kernel flat-index mask.
    check(k3, (2, 10, 20))

    print("KERNEL_OK")
</pallas_src>

<mosaic_0001>
module attributes {stable_mosaic.version = 11 : i64} {
  func.func @kernel(%arg0: i32, %arg1: i32, %arg2: i32, %arg3: memref<1x4x2x128xf32, #tpu.memory_space<vmem>>, %arg4: memref<1x2x128xi32, #tpu.memory_space<vmem>>, %arg5: memref<1x1x12x128xf32, #tpu.memory_space<vmem>>) attributes {dimension_semantics = [#tpu.dimension_semantics<parallel>, #tpu.dimension_semantics<parallel>, #tpu.dimension_semantics<arbitrary>], iteration_bounds = array<i64: 2, 1, 1>, scalar_prefetch = 0 : i64, scratch_operands = 0 : i64, tpu.core_type = #tpu.core_type<tc>, window_params = [{transform_indices = @transform_0, window_bounds = array<i64: 1, 4, 2, 128>}, {transform_indices = @transform_1, window_bounds = array<i64: 1, 2, 128>}, {transform_indices = @transform_2, window_bounds = array<i64: 1, 1, 12, 128>}]} {
    %c0_i32 = arith.constant 0 : i32
    %0 = arith.cmpi eq, %arg2, %c0_i32 : i32
    %1 = arith.extui %0 : i1 to i32
    %c0_i32_0 = arith.constant 0 : i32
    %2 = arith.cmpi ne, %1, %c0_i32_0 : i32
    scf.if %2 {
      %cst_128 = arith.constant 0.000000e+00 : f32
      %156 = vector.broadcast %cst_128 : f32 to vector<1x1x12x128xf32>
      %c0_129 = arith.constant 0 : index
      %c0_130 = arith.constant 0 : index
      %c0_131 = arith.constant 0 : index
      %c0_132 = arith.constant 0 : index
      %157 = vector.load %arg5[%c0_129, %c0_130, %c0_131, %c0_132] : memref<1x1x12x128xf32, #tpu.memory_space<vmem>>, vector<1x1x12x128xf32>
      tpu.vector_store %arg5[%c0_129, %c0_130, %c0_131, %c0_132], %156 {strides = array<i32>} : memref<1x1x12x128xf32, #tpu.memory_space<vmem>>, vector<1x1x12x128xf32>,
    } else {
    }
    %c0 = arith.constant 0 : index
    %c0_1 = arith.constant 0 : index
    %c0_2 = arith.constant 0 : index
    %3 = vector.load %arg4[%c0, %c0_1, %c0_2] : memref<1x2x128xi32, #tpu.memory_space<vmem>>, vector<1x2x128xi32>
    %4 = vector.shape_cast %3 : vector<1x2x128xi32> to vector<2x128xi32>
    %c0_3 = arith.constant 0 : index
    %c0_4 = arith.constant 0 : index
    %c0_5 = arith.constant 0 : index
    %c0_6 = arith.constant 0 : index
    %5 = vector.load %arg3[%c0_3, %c0_4, %c0_5, %c0_6] : memref<1x4x2x128xf32, #tpu.memory_space<vmem>>, vector<1x1x2x128xf32>
    %6 = vector.shape_cast %5 : vector<1x1x2x128xf32> to vector<2x128xf32>
    %c0_7 = arith.constant 0 : index
    %c1 = arith.constant 1 : index
    %c0_8 = arith.constant 0 : index
    %c0_9 = arith.constant 0 : index
    %7 = vector.load %arg3[%c0_7, %c1, %c0_8, %c0_9] : memref<1x4x2x128xf32, #tpu.memory_space<vmem>>, vector<1x1x2x128xf32>
    %8 = vector.shape_cast %7 : vector<1x1x2x128xf32> to vector<2x128xf32>
    %c0_10 = arith.constant 0 : index
    %c2 = arith.constant 2 : index
    %c0_11 = arith.constant 0 : index
    %c0_12 = arith.constant 0 : index
    %9 = vector.load %arg3[%c0_10, %c2, %c0_11, %c0_12] : memref<1x4x2x128xf32, #tpu.memory_space<vmem>>, vector<1x1x2x128xf32>
    %10 = vector.shape_cast %9 : vector<1x1x2x128xf32> to vector<2x128xf32>
    %c0_13 = arith.constant 0 : index
    %c3 = arith.constant 3 : index
    %c0_14 = arith.constant 0 : index
    %c0_15 = arith.constant 0 : index
    %11 = vector.load %arg3[%c0_13, %c3, %c0_14, %c0_15] : memref<1x4x2x128xf32, #tpu.memory_space<vmem>>, vector<1x1x2x128xf32>
    %12 = vector.shape_cast %11 : vector<1x1x2x128xf32> to vector<2x128xf32>
    %13 = arith.maximumf %6, %8 : vector<2x128xf32>
    %14 = arith.maximumf %13, %10 : vector<2x128xf32>
    %15 = arith.maximumf %14, %12 : vector<2x128xf32>
    %16 = arith.subf %6, %15 : vector<2x128xf32>
    %17 = math.exp %16 : vector<2x128xf32>
    %18 = arith.subf %8, %15 : vector<2x128xf32>
    %19 = math.exp %18 : vector<2x128xf32>
    %20 = arith.subf %10, %15 : vector<2x128xf32>
    %21 = math.exp %20 : vector<2x128xf32>
    %22 = arith.subf %12, %15 : vector<2x128xf32>
    %23 = math.exp %22 : vector<2x128xf32>
    %24 = arith.addf %17, %19 : vector<2x128xf32>
    %25 = arith.addf %24, %21 : vector<2x128xf32>
    %26 = arith.addf %25, %23 : vector<2x128xf32>
    %27 = tpu.reciprocal %26 : vector<2x128xf32> -> vector<2x128xf32>
    %28 = arith.mulf %17, %27 : vector<2x128xf32>
    %c0_i32_16 = arith.constant 0 : i32
    %29 = vector.broadcast %c0_i32_16 : i32 to vector<2x128xi32>
    %30 = arith.cmpi eq, %4, %29 : vector<2x128xi32>
    %cst = arith.constant 0.000000e+00 : f32
    %31 = vector.broadcast %cst : f32 to vector<2x128xf32>
    %32 = arith.select %30, %28, %31 : vector<2x128xi1>, vector<2x128xf32>
    %cst_17 = arith.constant dense<0.000000e+00> : vector<128xf32>
    %33 = vector.multi_reduction <add>, %32, %cst_17 [0] : vector<2x128xf32> to vector<128xf32>
    %34 = vector.shape_cast %33 : vector<128xf32> to vector<1x128xf32>
    %cst_18 = arith.constant dense<0.000000e+00> : vector<128xf32>
    %35 = vector.multi_reduction <add>, %28, %cst_18 [0] : vector<2x128xf32> to vector<128xf32>
    %36 = vector.shape_cast %35 : vector<128xf32> to vector<1x128xf32>
    %cst_19 = arith.constant 1.000000e+00 : f32
    %cst_20 = arith.constant 0.000000e+00 : f32
    %37 = vector.broadcast %cst_19 : f32 to vector<2x128xf32>
    %38 = vector.broadcast %cst_20 : f32 to vector<2x128xf32>
    %39 = arith.select %30, %37, %38 : vector<2x128xi1>, vector<2x128xf32>
    %cst_21 = arith.constant dense<0.000000e+00> : vector<128xf32>
    %40 = vector.multi_reduction <add>, %39, %cst_21 [0] : vector<2x128xf32> to vector<128xf32>
    %41 = vector.shape_cast %40 : vector<128xf32> to vector<1x128xf32>
    %c0_22 = arith.constant 0 : index
    %c0_23 = arith.constant 0 : index
    %c0_24 = arith.constant 0 : index
    %c0_25 = arith.constant 0 : index
    %42 = vector.load %arg5[%c0_22, %c0_23, %c0_24, %c0_25] : memref<1x1x12x128xf32, #tpu.memory_space<vmem>>, vector<1x1x1x128xf32>
    %43 = vector.shape_cast %42 : vector<1x1x1x128xf32> to vector<1x128xf32>
    %44 = arith.addf %43, %34 : vector<1x128xf32>
    %c0_26 = arith.constant 0 : index
    %c0_27 = arith.constant 0 : index
    %c0_28 = arith.constant 0 : index
    %c0_29 = arith.constant 0 : index
    %45 = vector.load %arg5[%c0_26, %c0_27, %c0_28, %c0_29] : memref<1x1x12x128xf32, #tpu.memory_space<vmem>>, vector<1x1x1x128xf32>
    %46 = vector.shape_cast %45 : vector<1x1x1x128xf32> to vector<1x128xf32>
    %47 = vector.shape_cast %44 : vector<1x128xf32> to vector<1x1x1x128xf32>
    tpu.vector_store %arg5[%c0_26, %c0_27, %c0_28, %c0_29], %47 {strides = array<i32>} : memref<1x1x12x128xf32, #tpu.memory_space<vmem>>, vector<1x1x1x128xf32>,
    %c0_30 = arith.constant 0 : index
    %c0_31 = arith.constant 0 : index
    %c4 = arith.constant 4 : index
    %c0_32 = arith.constant 0 : index
    %48 = vector.load %arg5[%c0_30, %c0_31, %c4, %c0_32] : memref<1x1x12x128xf32, #tpu.memory_space<vmem>>, vector<1x1x1x128xf32>
    %49 = vector.shape_cast %48 : vector<1x1x1x128xf32> to vector<1x128xf32>
    %50 = arith.addf %49, %36 : vector<1x128xf32>
    %c0_33 = arith.constant 0 : index
    %c0_34 = arith.constant 0 : index
    %c4_35 = arith.constant 4 : index
    %c0_36 = arith.constant 0 : index
    %51 = vector.load %arg5[%c0_33, %c0_34, %c4_35, %c0_36] : memref<1x1x12x128xf32, #tpu.memory_space<vmem>>, vector<1x1x1x128xf32>
    %52 = vector.shape_cast %51 : vector<1x1x1x128xf32> to vector<1x128xf32>
    %53 = vector.shape_cast %50 : vector<1x128xf32> to vector<1x1x1x128xf32>
    tpu.vector_store %arg5[%c0_33, %c0_34, %c4_35, %c0_36], %53 {strides = array<i32>} : memref<1x1x12x128xf32, #tpu.memory_space<vmem>>, vector<1x1x1x128xf32>,
    %c0_37 = arith.constant 0 : index
    %c0_38 = arith.constant 0 : index
    %c8 = arith.constant 8 : index
    %c0_39 = arith.constant 0 : index
    %54 = vector.load %arg5[%c0_37, %c0_38, %c8, %c0_39] : memref<1x1x12x128xf32, #tpu.memory_space<vmem>>, vector<1x1x1x128xf32>
    %55 = vector.shape_cast %54 : vector<1x1x1x128xf32> to vector<1x128xf32>
    %56 = arith.addf %55, %41 : vector<1x128xf32>
    %c0_40 = arith.constant 0 : index
    %c0_41 = arith.constant 0 : index
    %c8_42 = arith.constant 8 : index
    %c0_43 = arith.constant 0 : index
    %57 = vector.load %arg5[%c0_40, %c0_41, %c8_42, %c0_43] : memref<1x1x12x128xf32, #tpu.memory_space<vmem>>, vector<1x1x1x128xf32>
    %58 = vector.shape_cast %57 : vector<1x1x1x128xf32> to vector<1x128xf32>
    %59 = vector.shape_cast %56 : vector<1x128xf32> to vector<1x1x1x128xf32>
    tpu.vector_store %arg5[%c0_40, %c0_41, %c8_42, %c0_43], %59 {strides = array<i32>} : memref<1x1x12x128xf32, #tpu.memory_space<vmem>>, vector<1x1x1x128xf32>,
    %60 = arith.mulf %19, %27 : vector<2x128xf32>
    %c1_i32 = arith.constant 1 : i32
    %61 = vector.broadcast %c1_i32 : i32 to vector<2x128xi32>
    %62 = arith.cmpi eq, %4, %61 : vector<2x128xi32>
    %cst_44 = arith.constant 0.000000e+00 : f32
    %63 = vector.broadcast %cst_44 : f32 to vector<2x128xf32>
    %64 = arith.select %62, %60, %63 : vector<2x128xi1>, vector<2x128xf32>
    %cst_45 = arith.constant dense<0.000000e+00> : vector<128xf32>
    %65 = vector.multi_reduction <add>, %64, %cst_45 [0] : vector<2x128xf32> to vector<128xf32>
    %66 = vector.shape_cast %65 : vector<128xf32> to vector<1x128xf32>
    %cst_46 = arith.constant dense<0.000000e+00> : vector<128xf32>
    %67 = vector.multi_reduction <add>, %60, %cst_46 [0] : vector<2x128xf32> to vector<128xf32>
    %68 = vector.shape_cast %67 : vector<128xf32> to vector<1x128xf32>
    %cst_47 = arith.constant 1.000000e+00 : f32
    %cst_48 = arith.constant 0.000000e+00 : f32
    %69 = vector.broadcast %cst_47 : f32 to vector<2x128xf32>
    %70 = vector.broadcast %cst_48 : f32 to vector<2x128xf32>
    %71 = arith.select %62, %69, %70 : vector<2x128xi1>, vector<2x128xf32>
    %cst_49 = arith.constant dense<0.000000e+00> : vector<128xf32>
    %72 = vector.multi_reduction <add>, %71, %cst_49 [0] : vector<2x128xf32> to vector<128xf32>
    %73 = vector.shape_cast %72 : vector<128xf32> to vector<1x128xf32>
    %c0_50 = arith.constant 0 : index
    %c0_51 = arith.constant 0 : index
    %c1_52 = arith.constant 1 : index
    %c0_53 = arith.constant 0 : index
    %74 = vector.load %arg5[%c0_50, %c0_51, %c1_52, %c0_53] : memref<1x1x12x128xf32, #tpu.memory_space<vmem>>, vector<1x1x1x128xf32>
    %75 = vector.shape_cast %74 : vector<1x1x1x128xf32> to vector<1x128xf32>
    %76 = arith.addf %75, %66 : vector<1x128xf32>
    %c0_54 = arith.constant 0 : index
    %c0_55 = arith.constant 0 : index
    %c1_56 = arith.constant 1 : index
    %c0_57 = arith.constant 0 : index
    %77 = vector.load %arg5[%c0_54, %c0_55, %c1_56, %c0_57] : memref<1x1x12x128xf32, #tpu.memory_space<vmem>>, vector<1x1x1x128xf32>
    %78 = vector.shape_cast %77 : vector<1x1x1x128xf32> to vector<1x128xf32>
    %79 = vector.shape_cast %76 : vector<1x128xf32> to vector<1x1x1x128xf32>
    tpu.vector_store %arg5[%c0_54, %c0_55, %c1_56, %c0_57], %79 {strides = array<i32>} : memref<1x1x12x128xf32, #tpu.memory_space<vmem>>, vector<1x1x1x128xf32>,
    %c0_58 = arith.constant 0 : index
    %c0_59 = arith.constant 0 : index
    %c5 = arith.constant 5 : index
    %c0_60 = arith.constant 0 : index
    %80 = vector.load %arg5[%c0_58, %c0_59, %c5, %c0_60] : memref<1x1x12x128xf32, #tpu.memory_space<vmem>>, vector<1x1x1x128xf32>
    %81 = vector.shape_cast %80 : vector<1x1x1x128xf32> to vector<1x128xf32>
    %82 = arith.addf %81, %68 : vector<1x128xf32>
    %c0_61 = arith.constant 0 : index
    %c0_62 = arith.constant 0 : index
    %c5_63 = arith.constant 5 : index
    %c0_64 = arith.constant 0 : index
    %83 = vector.load %arg5[%c0_61, %c0_62, %c5_63, %c0_64] : memref<1x1x12x128xf32, #tpu.memory_space<vmem>>, vector<1x1x1x128xf32>
    %84 = vector.shape_cast %83 : vector<1x1x1x128xf32> to vector<1x128xf32>
    %85 = vector.shape_cast %82 : vector<1x128xf32> to vector<1x1x1x128xf32>
    tpu.vector_store %arg5[%c0_61, %c0_62, %c5_63, %c0_64], %85 {strides = array<i32>} : memref<1x1x12x128xf32, #tpu.memory_space<vmem>>, vector<1x1x1x128xf32>,
    %c0_65 = arith.constant 0 : index
    %c0_66 = arith.constant 0 : index
    %c9 = arith.constant 9 : index
    %c0_67 = arith.constant 0 : index
    %86 = vector.load %arg5[%c0_65, %c0_66, %c9, %c0_67] : memref<1x1x12x128xf32, #tpu.memory_space<vmem>>, vector<1x1x1x128xf32>
    %87 = vector.shape_cast %86 : vector<1x1x1x128xf32> to vector<1x128xf32>
    %88 = arith.addf %87, %73 : vector<1x128xf32>
    %c0_68 = arith.constant 0 : index
    %c0_69 = arith.constant 0 : index
    %c9_70 = arith.constant 9 : index
    %c0_71 = arith.constant 0 : index
    %89 = vector.load %arg5[%c0_68, %c0_69, %c9_70, %c0_71] : memref<1x1x12x128xf32, #tpu.memory_space<vmem>>, vector<1x1x1x128xf32>
    %90 = vector.shape_cast %89 : vector<1x1x1x128xf32> to vector<1x128xf32>
    %91 = vector.shape_cast %88 : vector<1x128xf32> to vector<1x1x1x128xf32>
    tpu.vector_store %arg5[%c0_68, %c0_69, %c9_70, %c0_71], %91 {strides = array<i32>} : memref<1x1x12x128xf32, #tpu.memory_space<vmem>>, vector<1x1x1x128xf32>,
    %92 = arith.mulf %21, %27 : vector<2x128xf32>
    %c2_i32 = arith.constant 2 : i32
    %93 = vector.broadcast %c2_i32 : i32 to vector<2x128xi32>
    %94 = arith.cmpi eq, %4, %93 : vector<2x128xi32>
    %cst_72 = arith.constant 0.000000e+00 : f32
    %95 = vector.broadcast %cst_72 : f32 to vector<2x128xf32>
    %96 = arith.select %94, %92, %95 : vector<2x128xi1>, vector<2x128xf32>
    %cst_73 = arith.constant dense<0.000000e+00> : vector<128xf32>
    %97 = vector.multi_reduction <add>, %96, %cst_73 [0] : vector<2x128xf32> to vector<128xf32>
    %98 = vector.shape_cast %97 : vector<128xf32> to vector<1x128xf32>
    %cst_74 = arith.constant dense<0.000000e+00> : vector<128xf32>
    %99 = vector.multi_reduction <add>, %92, %cst_74 [0] : vector<2x128xf32> to vector<128xf32>
    %100 = vector.shape_cast %99 : vector<128xf32> to vector<1x128xf32>
    %cst_75 = arith.constant 1.000000e+00 : f32
    %cst_76 = arith.constant 0.000000e+00 : f32
    %101 = vector.broadcast %cst_75 : f32 to vector<2x128xf32>
    %102 = vector.broadcast %cst_76 : f32 to vector<2x128xf32>
    %103 = arith.select %94, %101, %102 : vector<2x128xi1>, vector<2x128xf32>
    %cst_77 = arith.constant dense<0.000000e+00> : vector<128xf32>
    %104 = vector.multi_reduction <add>, %103, %cst_77 [0] : vector<2x128xf32> to vector<128xf32>
    %105 = vector.shape_cast %104 : vector<128xf32> to vector<1x128xf32>
    %c0_78 = arith.constant 0 : index
    %c0_79 = arith.constant 0 : index
    %c2_80 = arith.constant 2 : index
    %c0_81 = arith.constant 0 : index
    %106 = vector.load %arg5[%c0_78, %c0_79, %c2_80, %c0_81] : memref<1x1x12x128xf32, #tpu.memory_space<vmem>>, vector<1x1x1x128xf32>
    %107 = vector.shape_cast %106 : vector<1x1x1x128xf32> to vector<1x128xf32>
    %108 = arith.addf %107, %98 : vector<1x128xf32>
    %c0_82 = arith.constant 0 : index
    %c0_83 = arith.constant 0 : index
    %c2_84 = arith.constant 2 : index
    %c0_85 = arith.constant 0 : index
    %109 = vector.load %arg5[%c0_82, %c0_83, %c2_84, %c0_85] : memref<1x1x12x128xf32, #tpu.memory_space<vmem>>, vector<1x1x1x128xf32>
    %110 = vector.shape_cast %109 : vector<1x1x1x128xf32> to vector<1x128xf32>
    %111 = vector.shape_cast %108 : vector<1x128xf32> to vector<1x1x1x128xf32>
    tpu.vector_store %arg5[%c0_82, %c0_83, %c2_84, %c0_85], %111 {strides = array<i32>} : memref<1x1x12x128xf32, #tpu.memory_space<vmem>>, vector<1x1x1x128xf32>,
    %c0_86 = arith.constant 0 : index
    %c0_87 = arith.constant 0 : index
    %c6 = arith.constant 6 : index
    %c0_88 = arith.constant 0 : index
    %112 = vector.load %arg5[%c0_86, %c0_87, %c6, %c0_88] : memref<1x1x12x128xf32, #tpu.memory_space<vmem>>, vector<1x1x1x128xf32>
    %113 = vector.shape_cast %112 : vector<1x1x1x128xf32> to vector<1x128xf32>
    %114 = arith.addf %113, %100 : vector<1x128xf32>
    %c0_89 = arith.constant 0 : index
    %c0_90 = arith.constant 0 : index
    %c6_91 = arith.constant 6 : index
    %c0_92 = arith.constant 0 : index
    %115 = vector.load %arg5[%c0_89, %c0_90, %c6_91, %c0_92] : memref<1x1x12x128xf32, #tpu.memory_space<vmem>>, vector<1x1x1x128xf32>
    %116 = vector.shape_cast %115 : vector<1x1x1x128xf32> to vector<1x128xf32>
    %117 = vector.shape_cast %114 : vector<1x128xf32> to vector<1x1x1x128xf32>
    tpu.vector_store %arg5[%c0_89, %c0_90, %c6_91, %c0_92], %117 {strides = array<i32>} : memref<1x1x12x128xf32, #tpu.memory_space<vmem>>, vector<1x1x1x128xf32>,
    %c0_93 = arith.constant 0 : index
    %c0_94 = arith.constant 0 : index
    %c10 = arith.constant 10 : index
    %c0_95 = arith.constant 0 : index
    %118 = vector.load %arg5[%c0_93, %c0_94, %c10, %c0_95] : memref<1x1x12x128xf32, #tpu.memory_space<vmem>>, vector<1x1x1x128xf32>
    %119 = vector.shape_cast %118 : vector<1x1x1x128xf32> to vector<1x128xf32>
    %120 = arith.addf %119, %105 : vector<1x128xf32>
    %c0_96 = arith.constant 0 : index
    %c0_97 = arith.constant 0 : index
    %c10_98 = arith.constant 10 : index
    %c0_99 = arith.constant 0 : index
    %121 = vector.load %arg5[%c0_96, %c0_97, %c10_98, %c0_99] : memref<1x1x12x128xf32, #tpu.memory_space<vmem>>, vector<1x1x1x128xf32>
    %122 = vector.shape_cast %121 : vector<1x1x1x128xf32> to vector<1x128xf32>
    %123 = vector.shape_cast %120 : vector<1x128xf32> to vector<1x1x1x128xf32>
    tpu.vector_store %arg5[%c0_96, %c0_97, %c10_98, %c0_99], %123 {strides = array<i32>} : memref<1x1x12x128xf32, #tpu.memory_space<vmem>>, vector<1x1x1x128xf32>,
    %124 = arith.mulf %23, %27 : vector<2x128xf32>
    %c3_i32 = arith.constant 3 : i32
    %125 = vector.broadcast %c3_i32 : i32 to vector<2x128xi32>
    %126 = arith.cmpi eq, %4, %125 : vector<2x128xi32>
    %cst_100 = arith.constant 0.000000e+00 : f32
    %127 = vector.broadcast %cst_100 : f32 to vector<2x128xf32>
    %128 = arith.select %126, %124, %127 : vector<2x128xi1>, vector<2x128xf32>
    %cst_101 = arith.constant dense<0.000000e+00> : vector<128xf32>
    %129 = vector.multi_reduction <add>, %128, %cst_101 [0] : vector<2x128xf32> to vector<128xf32>
    %130 = vector.shape_cast %129 : vector<128xf32> to vector<1x128xf32>
    %cst_102 = arith.constant dense<0.000000e+00> : vector<128xf32>
    %131 = vector.multi_reduction <add>, %124, %cst_102 [0] : vector<2x128xf32> to vector<128xf32>
    %132 = vector.shape_cast %131 : vector<128xf32> to vector<1x128xf32>
    %cst_103 = arith.constant 1.000000e+00 : f32
    %cst_104 = arith.constant 0.000000e+00 : f32
    %133 = vector.broadcast %cst_103 : f32 to vector<2x128xf32>
    %134 = vector.broadcast %cst_104 : f32 to vector<2x128xf32>
    %135 = arith.select %126, %133, %134 : vector<2x128xi1>, vector<2x128xf32>
    %cst_105 = arith.constant dense<0.000000e+00> : vector<128xf32>
    %136 = vector.multi_reduction <add>, %135, %cst_105 [0] : vector<2x128xf32> to vector<128xf32>
    %137 = vector.shape_cast %136 : vector<128xf32> to vector<1x128xf32>
    %c0_106 = arith.constant 0 : index
    %c0_107 = arith.constant 0 : index
    %c3_108 = arith.constant 3 : index
    %c0_109 = arith.constant 0 : index
    %138 = vector.load %arg5[%c0_106, %c0_107, %c3_108, %c0_109] : memref<1x1x12x128xf32, #tpu.memory_space<vmem>>, vector<1x1x1x128xf32>
    %139 = vector.shape_cast %138 : vector<1x1x1x128xf32> to vector<1x128xf32>
    %140 = arith.addf %139, %130 : vector<1x128xf32>
    %c0_110 = arith.constant 0 : index
    %c0_111 = arith.constant 0 : index
    %c3_112 = arith.constant 3 : index
    %c0_113 = arith.constant 0 : index
    %141 = vector.load %arg5[%c0_110, %c0_111, %c3_112, %c0_113] : memref<1x1x12x128xf32, #tpu.memory_space<vmem>>, vector<1x1x1x128xf32>
    %142 = vector.shape_cast %141 : vector<1x1x1x128xf32> to vector<1x128xf32>
    %143 = vector.shape_cast %140 : vector<1x128xf32> to vector<1x1x1x128xf32>
    tpu.vector_store %arg5[%c0_110, %c0_111, %c3_112, %c0_113], %143 {strides = array<i32>} : memref<1x1x12x128xf32, #tpu.memory_space<vmem>>, vector<1x1x1x128xf32>,
    %c0_114 = arith.constant 0 : index
    %c0_115 = arith.constant 0 : index
    %c7 = arith.constant 7 : index
    %c0_116 = arith.constant 0 : index
    %144 = vector.load %arg5[%c0_114, %c0_115, %c7, %c0_116] : memref<1x1x12x128xf32, #tpu.memory_space<vmem>>, vector<1x1x1x128xf32>
    %145 = vector.shape_cast %144 : vector<1x1x1x128xf32> to vector<1x128xf32>
    %146 = arith.addf %145, %132 : vector<1x128xf32>
    %c0_117 = arith.constant 0 : index
    %c0_118 = arith.constant 0 : index
    %c7_119 = arith.constant 7 : index
    %c0_120 = arith.constant 0 : index
    %147 = vector.load %arg5[%c0_117, %c0_118, %c7_119, %c0_120] : memref<1x1x12x128xf32, #tpu.memory_space<vmem>>, vector<1x1x1x128xf32>
    %148 = vector.shape_cast %147 : vector<1x1x1x128xf32> to vector<1x128xf32>
    %149 = vector.shape_cast %146 : vector<1x128xf32> to vector<1x1x1x128xf32>
    tpu.vector_store %arg5[%c0_117, %c0_118, %c7_119, %c0_120], %149 {strides = array<i32>} : memref<1x1x12x128xf32, #tpu.memory_space<vmem>>, vector<1x1x1x128xf32>,
    %c0_121 = arith.constant 0 : index
    %c0_122 = arith.constant 0 : index
    %c11 = arith.constant 11 : index
    %c0_123 = arith.constant 0 : index
    %150 = vector.load %arg5[%c0_121, %c0_122, %c11, %c0_123] : memref<1x1x12x128xf32, #tpu.memory_space<vmem>>, vector<1x1x1x128xf32>
    %151 = vector.shape_cast %150 : vector<1x1x1x128xf32> to vector<1x128xf32>
    %152 = arith.addf %151, %137 : vector<1x128xf32>
    %c0_124 = arith.constant 0 : index
    %c0_125 = arith.constant 0 : index
    %c11_126 = arith.constant 11 : index
    %c0_127 = arith.constant 0 : index
    %153 = vector.load %arg5[%c0_124, %c0_125, %c11_126, %c0_127] : memref<1x1x12x128xf32, #tpu.memory_space<vmem>>, vector<1x1x1x128xf32>
    %154 = vector.shape_cast %153 : vector<1x1x1x128xf32> to vector<1x128xf32>
    %155 = vector.shape_cast %152 : vector<1x128xf32> to vector<1x1x1x128xf32>
    tpu.vector_store %arg5[%c0_124, %c0_125, %c11_126, %c0_127], %155 {strides = array<i32>} : memref<1x1x12x128xf32, #tpu.memory_space<vmem>>, vector<1x1x1x128xf32>,
    return
  }
  func.func @transform_0(%arg0: i32, %arg1: i32, %arg2: i32) -> (i32, i32, i32, i32) {
    %c1_i32 = arith.constant 1 : i32
    %0 = arith.muli %arg1, %c1_i32 : i32
    %1 = arith.addi %0, %arg2 : i32
    %c0_i32 = arith.constant 0 : i32
    %c0_i32_0 = arith.constant 0 : i32
    %c0_i32_1 = arith.constant 0 : i32
    return %arg0, %c0_i32, %1, %c0_i32_0 : i32, i32, i32, i32
  }
  func.func @transform_1(%arg0: i32, %arg1: i32, %arg2: i32) -> (i32, i32, i32) {
    %c1_i32 = arith.constant 1 : i32
    %0 = arith.muli %arg1, %c1_i32 : i32
    %1 = arith.addi %0, %arg2 : i32
    %c0_i32 = arith.constant 0 : i32
    %c0_i32_0 = arith.constant 0 : i32
    return %arg0, %1, %c0_i32 : i32, i32, i32
  }
  func.func @transform_2(%arg0: i32, %arg1: i32, %arg2: i32) -> (i32, i32, i32, i32) {
    %c0_i32 = arith.constant 0 : i32
    %c0_i32_0 = arith.constant 0 : i32
    %c0_i32_1 = arith.constant 0 : i32
    return %arg0, %arg1, %c0_i32, %c0_i32_0 : i32, i32, i32, i32
  }
}

</mosaic_0001>

<llo_original>
// kernel: tpu_custom_call.1
$region0: #{tpu_custom_call.1}
  #allocation0 [shape = 'u32[]', space=smem, size = 0x4, offset = 0x4, fixed_abs, tag = 'smem constant byte address 0x4 - core index']
  #allocation1 [shape = 'u32[144,128]{1,0:T(1,128)}', space=vmem, size = 0x12000, scoped, tag = 'internal scratch']
  %s0 = inlined_call_operand.hbm [shape: f32[2,4,2,128], index: 0, kind: input, shape index: {}]
  %s1 = inlined_call_operand.hbm [shape: s32[2,2,128], index: 1, kind: input, shape index: {}]
  %s2 = inlined_call_operand.vmem [shape: f32[2,1,12,128], index: 2, kind: output, shape index: {}]
  %s3 = sld [smem:[#allocation0]]
  $region53: #{tpu_custom_call.1} parent=0
    _
  %s5 = ssub.s32 1, %s3
  %s6 = scalar_select 0, %s5, %s3
  $region1: #{tpu_custom_call.1} parent=0
    #allocation2 [shape = 'u8[8192]{0}', space=vmem, size = 0x2000, scoped, tag = 'input window, operand 0']
    #allocation3 [shape = 's32[2]{0}', space=sflag, size = 0x8, scoped, tag = 'scoped memory for tpu_custom_call.1']
    #allocation4 [shape = 'u8[2048]{0}', space=vmem, size = 0x800, scoped, tag = 'input window, operand 1']
    #allocation5 [shape = 's32[2]{0}', space=sflag, size = 0x8, scoped, tag = 'scoped memory for tpu_custom_call.1']
    %7 = vsyncpa [#allocation3], 0
    %s8 = scalar_lea.sflag [#allocation3], 1
    %9 = vsyncpa %s8, 0
    %10 = vsyncpa [#allocation5], 0
    %s11 = scalar_lea.sflag [#allocation5], 1
    %12 = vsyncpa %s11, 0
    loop: start=0, step=1, limit=4
    $region2: #{tpu_custom_call.1} parent=1 // loop_pre_header
      _
    $region3: #{tpu_custom_call.1} parent=1 // loop_header
      %s14 = sphi 0, %s18
      %p15 = scmp.ge.s32.totalorder %s14, 4
      %s21 = sphi 0, %s40
      %s22 = sphi 0, %s36
      %s23 = sphi 0, %s32
      %s24 = sphi 0, %s21
      %s25 = sphi 0, %s22
      %s26 = sphi 0, %s23
      %s27 = sphi 0, %s24
      %s28 = sphi 0, %s25
      %s29 = sphi 0, %s26
      %s47 = sphi 0, %s49
      %s50 = sphi 0, %s47
      %s51 = sphi 0, %s50
      %s67 = sphi 0, %s51
      %s77 = sphi 0, %s79
      %s80 = sphi 0, %s77
      %s81 = sphi 0, %s80
      %s97 = sphi 0, %s81
      %s105 = sphi 0, %s107
      %s108 = sphi 0, %s105
      %s109 = sphi 0, %s108
      %s125 = sphi 0, %s109
    $region4: #{tpu_custom_call.1} parent=1 // loop_header_branch
      %17 = sbr.rel (%p15) target = $region8
    $region5: #{tpu_custom_call.1} parent=1 // loop_body
      %s19 = ssub.s32 %s14, 1
      %s20 = ssub.s32 %s14, 2
      %s30 = sadd.s32 1, %s23
      %p31 = scmp.ge.s32.totalorder %s30, 1
      %s32 = scalar_select %p31, 0, %s30
      %s33 = sadd.s32 1, %s22
      %s34 = scalar_select %p31, %s33, %s22
      %p35 = scmp.ge.s32.totalorder %s34, 1
      %s36 = scalar_select %p35, 0, %s34
      %s37 = sadd.s32 1, %s21
      %s38 = scalar_select %p35, %s37, %s21
      %p39 = scmp.ge.s32.totalorder %s38, 2
      %s40 = scalar_select %p39, 0, %s38
      %s41 = sadd.s32 %s22, %s23
      %s42 = sadd.s32 %s36, %s32
      %s43 = ssub.s32 %s21, %s40
      %s44 = ssub.s32 %s41, %s42
      %s45 = sor.u32 %s43, %s44
      %p46 = scmp.eq.s32.totalorder %s45, 0
      %s48 = sadd.s32 %s47, 1
      %s49 = scalar_select %p46, %s47, %s48
      %p52 = pneg %p46
      %p53 = scmp.eq.s32.totalorder %s14, 1
      %p54 = por %p52, %p53
      %p55 = scmp.ne.s32.totalorder %s47, %s50
      %p56 = scmp.eq.s32.totalorder %s14, 0
      %p57 = por %p55, %p56
      %p58 = scmp.ne.s32.totalorder %s47, %s50
      %p59 = scmp.eq.s32.totalorder %s19, 1
      %p60 = por %p58, %p59
      %p61 = scmp.ne.s32.totalorder %s50, %s51
      %p62 = scmp.eq.s32.totalorder %s19, 0
      %p63 = por %p61, %p62
      %p64 = scmp.ne.s32.totalorder %s50, %s51
      %p65 = scmp.eq.s32.totalorder %s20, 1
      %p66 = por %p64, %p65
      %p68 = scmp.ne.s32.totalorder %s51, %s67
      %p69 = scmp.eq.s32.totalorder %s20, 0
      %p70 = por %p68, %p69
      %s71 = sadd.s32 %s22, %s23
      %s72 = sadd.s32 %s36, %s32
      %s73 = ssub.s32 %s21, %s40
      %s74 = ssub.s32 %s71, %s72
      %s75 = sor.u32 %s73, %s74
      %p76 = scmp.eq.s32.totalorder %s75, 0
      %s78 = sadd.s32 %s77, 1
      %s79 = scalar_select %p76, %s77, %s78
      %p82 = pneg %p76
      %p83 = scmp.eq.s32.totalorder %s14, 1
      %p84 = por %p82, %p83
      %p85 = scmp.ne.s32.totalorder %s77, %s80
      %p86 = scmp.eq.s32.totalorder %s14, 0
      %p87 = por %p85, %p86
      %p88 = scmp.ne.s32.totalorder %s77, %s80
      %p89 = scmp.eq.s32.totalorder %s19, 1
      %p90 = por %p88, %p89
      %p91 = scmp.ne.s32.totalorder %s80, %s81
      %p92 = scmp.eq.s32.totalorder %s19, 0
      %p93 = por %p91, %p92
      %p94 = scmp.ne.s32.totalorder %s80, %s81
      %p95 = scmp.eq.s32.totalorder %s20, 1
      %p96 = por %p94, %p95
      %p98 = scmp.ne.s32.totalorder %s81, %s97
      %p99 = scmp.eq.s32.totalorder %s20, 0
      %p100 = por %p98, %p99
      %s101 = ssub.s32 %s21, %s40
      %s102 = ssub.s32 %s22, %s36
      %s103 = sor.u32 %s101, %s102
      %p104 = scmp.eq.s32.totalorder %s103, 0
      %s106 = sadd.s32 %s105, 1
      %s107 = scalar_select %p104, %s105, %s106
      %p110 = pneg %p104
      %p111 = scmp.eq.s32.totalorder %s14, 1
      %p112 = por %p110, %p111
      %p113 = scmp.ne.s32.totalorder %s105, %s108
      %p114 = scmp.eq.s32.totalorder %s14, 0
      %p115 = por %p113, %p114
      %p116 = scmp.ne.s32.totalorder %s105, %s108
      %p117 = scmp.eq.s32.totalorder %s19, 1
      %p118 = por %p116, %p117
      %p119 = scmp.ne.s32.totalorder %s108, %s109
      %p120 = scmp.eq.s32.totalorder %s19, 0
      %p121 = por %p119, %p120
      %p122 = scmp.ne.s32.totalorder %s108, %s109
      %p123 = scmp.eq.s32.totalorder %s20, 1
      %p124 = por %p122, %p123
      %p126 = scmp.ne.s32.totalorder %s109, %s125
      %p127 = scmp.eq.s32.totalorder %s20, 0
      %p128 = por %p126, %p127
      %p129 = scmp.le.s32.totalorder 1, %s14
      %p130 = scmp.lt.s32.totalorder %s14, 3
      %p131 = pnand %p129, %p130
      %p132 = pneg %p131
      // Predicated region
      $region9: #{tpu_custom_call.1} parent=5 // pred_check
        _
      $region10: #{tpu_custom_call.1} parent=5 // pred_check_branch
        %134 = sbr.rel (%p131) target = $region12
      $region11: #{tpu_custom_call.1} parent=5 // pred_region
        %s135 = ssub.s32 %s14, 1
      $region12: #{tpu_custom_call.1} parent=5 // pred_fallthru
        _
      %p136 = scmp.lt.s32.totalorder %s14, 2
      // Predicated region
      $region13: #{tpu_custom_call.1} parent=5 // pred_check
        %p137 = pneg %p136
      $region14: #{tpu_custom_call.1} parent=5 // pred_check_branch
        %139 = sbr.rel (%p137) target = $region16
      $region15: #{tpu_custom_call.1} parent=5 // pred_region
        // Predicated region
        $region17: #{tpu_custom_call.1} parent=15 // pred_check
          %p140 = pneg %p57
        $region18: #{tpu_custom_call.1} parent=15 // pred_check_branch
          %142 = sbr.rel (%p140) target = $region20
        $region19: #{tpu_custom_call.1} parent=15 // pred_region
          %s143 = sand.u32 %s47, 1
          %s144 = scalar_lea.sflag [#allocation3], %s143
          %s145 = sand.u32 %s47, 1
          %s146 = smul.addr %s145, 8
          %s147 = scalar_lea.vmem [#allocation2], %s146
          %s148 = sadd.s32 %s22, %s23
          %s150 = ssub.s32 128, 128
          %151 = vsyncadd %s144, %s150
          %s152 = smul.addr %s21, 4
          %s153 = sadd.s32 %s148, %s152
          %s154 = smul.addr %s153, 32
          %s155 = scalar_lea.hbm %s0, %s154
          %s156 = sshll.u32 %s147, 4
          %s157 = int_to_ptr.vmem [resolvable:$true] %s156
          %162 = dma.hbm_to_vmem [thread:$0]  %s155, 128, %s157, %s144, 32, 32, 2
        $region20: #{tpu_custom_call.1} parent=15 // pred_fallthru
          _
        // Predicated region
        $region21: #{tpu_custom_call.1} parent=15 // pred_check
          %p163 = pneg %p87
        $region22: #{tpu_custom_call.1} parent=15 // pred_check_branch
          %165 = sbr.rel (%p163) target = $region24
        $region23: #{tpu_custom_call.1} parent=15 // pred_region
          %s166 = sand.u32 %s77, 1
          %s167 = scalar_lea.sflag [#allocation5], %s166
          %s168 = sand.u32 %s77, 1
          %s169 = smul.addr %s168, 2
          %s170 = scalar_lea.vmem [#allocation4], %s169
          %s171 = sadd.s32 %s22, %s23
          %s173 = ssub.s32 32, 32
          %174 = vsyncadd %s167, %s173
          %s175 = sadd.s32 %s171, %s21
          %s176 = smul.addr %s175, 32
          %s177 = scalar_lea.hbm %s1, %s176
          %s179 = sshll.u32 %s170, 4
          %s180 = int_to_ptr.vmem [resolvable:$true] %s179
          %182 = dma.hbm_to_vmem [thread:$0]  %s177, 32, %s180, %s167
        $region24: #{tpu_custom_call.1} parent=15 // pred_fallthru
          _
      $region16: #{tpu_custom_call.1} parent=5 // pred_fallthru
        _
      %p183 = scmp.le.s32.totalorder 1, %s14
      %p184 = scmp.lt.s32.totalorder %s14, 3
      %p185 = pnand %p183, %p184
      %p186 = pneg %p185
      // Predicated region
      $region25: #{tpu_custom_call.1} parent=5 // pred_check
        _
      $region26: #{tpu_custom_call.1} parent=5 // pred_check_branch
        %188 = sbr.rel (%p185) target = $region28
      $region27: #{tpu_custom_call.1} parent=5 // pred_region
        %s189 = ssub.s32 %s14, 1
        %s190 = sand.u32 %s50, 1
        %s191 = scalar_lea.sflag [#allocation3], %s190
        %s192 = sand.u32 %s50, 1
        %s193 = smul.addr %s192, 8
        %s194 = scalar_lea.vmem [#allocation2], %s193
        // Predicated region
        $region29: #{tpu_custom_call.1} parent=27 // pred_check
          %p195 = pneg %p63
        $region30: #{tpu_custom_call.1} parent=27 // pred_check_branch
          %197 = sbr.rel (%p195) target = $region32
        $region31: #{tpu_custom_call.1} parent=27 // pred_region
          %198 = dma.done %s191, 128
        $region32: #{tpu_custom_call.1} parent=27 // pred_fallthru
          _
        %s199 = sand.u32 %s80, 1
        %s200 = scalar_lea.sflag [#allocation5], %s199
        %s201 = sand.u32 %s80, 1
        %s202 = smul.addr %s201, 2
        %s203 = scalar_lea.vmem [#allocation4], %s202
        // Predicated region
        $region33: #{tpu_custom_call.1} parent=27 // pred_check
          %p204 = pneg %p93
        $region34: #{tpu_custom_call.1} parent=27 // pred_check_branch
          %206 = sbr.rel (%p204) target = $region36
        $region35: #{tpu_custom_call.1} parent=27 // pred_region
          %207 = dma.done %s200, 32
        $region36: #{tpu_custom_call.1} parent=27 // pred_fallthru
          _
        %s208 = sand.u32 %s50, 1
        %s209 = scalar_lea.sflag [#allocation3], %s208
        %s210 = sand.u32 %s50, 1
        %s211 = smul.addr %s210, 8
        %s212 = scalar_lea.vmem [#allocation2], %s211
        %p213 = pneg %p63
        %p214 = pneg %p60
        %s215 = sand.u32 %s80, 1
        %s216 = scalar_lea.sflag [#allocation5], %s215
        %s217 = sand.u32 %s80, 1
        %s218 = smul.addr %s217, 2
        %s219 = scalar_lea.vmem [#allocation4], %s218
        %p220 = pneg %p93
        %p221 = pneg %p90
        %p222 = pneg %p121
        %p223 = pneg %p118
        %p224 = scmp.lt.s32.totalorder %s24, 1
        %s225 = scalar_select %p224, %s24, 1
        %p226 = scmp.lt.s32.totalorder %s25, 0
        %s227 = scalar_select %p226, %s25, 0
        %s228 = smul.addr %s227, 2
        %s229 = smul.addr %s225, 2
        %s230 = sadd.s32 %s228, %s229
        %s231 = smul.addr %s230, 8
        %s232 = scalar_lea.vmem %s2, %s231
        %s233 = sadd.s32 %s25, %s26
        %s234 = sadd.s32 %s25, %s26
        %p235 = scmp.lt.s32.totalorder %s24, 1
        %s236 = scalar_select %p235, %s24, 1
        %p237 = scmp.lt.s32.totalorder %s25, 0
        %s238 = scalar_select %p237, %s25, 0
        %s239 = smul.addr %s238, 2
        %s240 = smul.addr %s236, 2
        %s241 = sadd.s32 %s239, %s240
        %s242 = smul.addr %s241, 8
        %s243 = scalar_lea.vmem %s2, %s242
        %p244 = scmp.eq.s32.totalorder %s26, 0
        // Predicated region
        $region37: #{tpu_custom_call.1} parent=27 // pred_check
          %p245 = pneg %p244
        $region38: #{tpu_custom_call.1} parent=27 // pred_check_branch
          %247 = sbr.rel (%p245) target = $region40
        $region39: #{tpu_custom_call.1} parent=27 // pred_region
          %248 = vst [vmem:[%s243] sm:$0xff] 0.0
          %249 = vst [vmem:[%s243 + $0x8] sm:$0xf] 0.0
        $region40: #{tpu_custom_call.1} parent=27 // pred_fallthru
          _
        %v250 = vld [vmem:[%s203] sm:$0x3]
        %v251 = vld [vmem:[%s194] sm:$0x3]
        %s252 = scalar_lea.vmem %s194, 2 [#allocation2]
        %v253 = vld [vmem:[%s252] sm:$0x3]
        %s254 = scalar_lea.vmem %s194, 4 [#allocation2]
        %v255 = vld [vmem:[%s254] sm:$0x3]
        %s256 = scalar_lea.vmem %s194, 6 [#allocation2]
        %v257 = vld [vmem:[%s256] sm:$0x3]
        %v258 = vmax.f32 %v251, %v253
        %v259 = vmax.f32 %v258, %v255
        %v260 = vmax.f32 %v259, %v257
        %v261 = vsub.f32 %v251, %v260
        %v262 = vmul.f32 %v261, 1.442695
        %v263 = vpow.pop %v262
        %v264 = vsub.f32 %v253, %v260
        %v265 = vmul.f32 %v264, 1.442695
        %v266 = vpow.pop %v265
        %v267 = vsub.f32 %v255, %v260
        %v268 = vmul.f32 %v267, 1.442695
        %v269 = vpow.pop %v268
        %v270 = vsub.f32 %v257, %v260
        %v271 = vmul.f32 %v270, 1.442695
        %v272 = vpow.pop %v271
        %v273 = vadd.f32 %v263, %v266
        %v274 = vadd.f32 %v273, %v269
        %v275 = vadd.f32 %v274, %v272
        %v276 = vrcp.pop %v275
        %v277 = vmul.f32 %v263, %v276
        %vm278 = vcmp.eq.s32.totalorder %v250, 0
        %v279 = vsel %vm278, %v277, 0.0
        %vm280 = vcmask 1041408
        %v281 = vsel %vm280, %v279, 0.0
        %v282 = vrot.slane %v281, 4
        %v283 = vadd.f32 %v281, %v282
        %v284 = vrot.slane %v283, 2
        %v285 = vadd.f32 %v283, %v284
        %v286 = vrot.slane %v285, 1
        %v287 = vadd.f32 %v285, %v286
        %v288 = vsel %vm280, %v277, 0.0
        %v289 = vrot.slane %v288, 4
        %v290 = vadd.f32 %v288, %v289
        %v291 = vrot.slane %v290, 2
        %v292 = vadd.f32 %v290, %v291
        %v293 = vrot.slane %v292, 1
        %v294 = vadd.f32 %v292, %v293
        %v295 = vsel %vm278, 1.0, 0.0
        %v296 = vsel %vm280, %v295, 0.0
        %v297 = vrot.slane %v296, 4
        %v298 = vadd.f32 %v296, %v297
        %v299 = vrot.slane %v298, 2
        %v300 = vadd.f32 %v298, %v299
        %v301 = vrot.slane %v300, 1
        %v302 = vadd.f32 %v300, %v301
        %v303 = vld [vmem:[%s243] sm:$0x1]
        %v304 = vadd.f32 %v303, %v287
        %305 = vst [vmem:[%s243] sm:$0x1] %v304
        %v306 = vld [vmem:[%s243 + $0x4] sm:$0x1]
        %v307 = vadd.f32 %v306, %v294
        %308 = vst [vmem:[%s243 + $0x4] sm:$0x1] %v307
        %v309 = vld [vmem:[%s243 + $0x8] sm:$0x1]
        %v310 = vadd.f32 %v309, %v302
        %311 = vst [vmem:[%s243 + $0x8] sm:$0x1] %v310
        %v312 = vmul.f32 %v266, %v276
        %vm313 = vcmp.eq.s32.totalorder %v250, 1
        %v314 = vsel %vm313, %v312, 0.0
        %v315 = vsel %vm280, %v314, 0.0
        %v316 = vrot.slane %v315, 4
        %v317 = vadd.f32 %v315, %v316
        %v318 = vrot.slane %v317, 2
        %v319 = vadd.f32 %v317, %v318
        %v320 = vrot.slane %v319, 1
        %v321 = vadd.f32 %v319, %v320
        %v322 = vsel %vm280, %v312, 0.0
        %v323 = vrot.slane %v322, 4
        %v324 = vadd.f32 %v322, %v323
        %v325 = vrot.slane %v324, 2
        %v326 = vadd.f32 %v324, %v325
        %v327 = vrot.slane %v326, 1
        %v328 = vadd.f32 %v326, %v327
        %v329 = vsel %vm313, 1.0, 0.0
        %v330 = vsel %vm280, %v329, 0.0
        %v331 = vrot.slane %v330, 4
        %v332 = vadd.f32 %v330, %v331
        %v333 = vrot.slane %v332, 2
        %v334 = vadd.f32 %v332, %v333
        %v335 = vrot.slane %v334, 1
        %v336 = vadd.f32 %v334, %v335
        %v337 = vld [vmem:[%s243 + $0x1] sm:$0x1]
        %v338 = vadd.f32 %v337, %v321
        %339 = vst [vmem:[%s243 + $0x1] sm:$0x1] %v338
        %v340 = vld [vmem:[%s243 + $0x5] sm:$0x1]
        %v341 = vadd.f32 %v340, %v328
        %342 = vst [vmem:[%s243 + $0x5] sm:$0x1] %v341
        %v343 = vld [vmem:[%s243 + $0x9] sm:$0x1]
        %v344 = vadd.f32 %v343, %v336
        %345 = vst [vmem:[%s243 + $0x9] sm:$0x1] %v344
        %v346 = vmul.f32 %v269, %v276
        %vm347 = vcmp.eq.s32.totalorder %v250, 2
        %v348 = vsel %vm347, %v346, 0.0
        %v349 = vsel %vm280, %v348, 0.0
        %v350 = vrot.slane %v349, 4
        %v351 = vadd.f32 %v349, %v350
        %v352 = vrot.slane %v351, 2
        %v353 = vadd.f32 %v351, %v352
        %v354 = vrot.slane %v353, 1
        %v355 = vadd.f32 %v353, %v354
        %v356 = vsel %vm280, %v346, 0.0
        %v357 = vrot.slane %v356, 4
        %v358 = vadd.f32 %v356, %v357
        %v359 = vrot.slane %v358, 2
        %v360 = vadd.f32 %v358, %v359
        %v361 = vrot.slane %v360, 1
        %v362 = vadd.f32 %v360, %v361
        %v363 = vsel %vm347, 1.0, 0.0
        %v364 = vsel %vm280, %v363, 0.0
        %v365 = vrot.slane %v364, 4
        %v366 = vadd.f32 %v364, %v365
        %v367 = vrot.slane %v366, 2
        %v368 = vadd.f32 %v366, %v367
        %v369 = vrot.slane %v368, 1
        %v370 = vadd.f32 %v368, %v369
        %v371 = vld [vmem:[%s243 + $0x2] sm:$0x1]
        %v372 = vadd.f32 %v371, %v355
        %373 = vst [vmem:[%s243 + $0x2] sm:$0x1] %v372
        %v374 = vld [vmem:[%s243 + $0x6] sm:$0x1]
        %v375 = vadd.f32 %v374, %v362
        %376 = vst [vmem:[%s243 + $0x6] sm:$0x1] %v375
        %v377 = vld [vmem:[%s243 + $0xa] sm:$0x1]
        %v378 = vadd.f32 %v377, %v370
        %379 = vst [vmem:[%s243 + $0xa] sm:$0x1] %v378
        %v380 = vmul.f32 %v272, %v276
        %vm381 = vcmp.eq.s32.totalorder %v250, 3
        %v382 = vsel %vm381, %v380, 0.0
        %v383 = vsel %vm280, %v382, 0.0
        %v384 = vrot.slane %v383, 4
        %v385 = vadd.f32 %v383, %v384
        %v386 = vrot.slane %v385, 2
        %v387 = vadd.f32 %v385, %v386
        %v388 = vrot.slane %v387, 1
        %v389 = vadd.f32 %v387, %v388
        %v390 = vsel %vm280, %v380, 0.0
        %v391 = vrot.slane %v390, 4
        %v392 = vadd.f32 %v390, %v391
        %v393 = vrot.slane %v392, 2
        %v394 = vadd.f32 %v392, %v393
        %v395 = vrot.slane %v394, 1
        %v396 = vadd.f32 %v394, %v395
        %v397 = vsel %vm381, 1.0, 0.0
        %v398 = vsel %vm280, %v397, 0.0
        %v399 = vrot.slane %v398, 4
        %v400 = vadd.f32 %v398, %v399
        %v401 = vrot.slane %v400, 2
        %v402 = vadd.f32 %v400, %v401
        %v403 = vrot.slane %v402, 1
        %v404 = vadd.f32 %v402, %v403
        %v405 = vld [vmem:[%s243 + $0x3] sm:$0x1]
        %v406 = vadd.f32 %v405, %v389
        %407 = vst [vmem:[%s243 + $0x3] sm:$0x1] %v406
        %v408 = vld [vmem:[%s243 + $0x7] sm:$0x1]
        %v409 = vadd.f32 %v408, %v396
        %410 = vst [vmem:[%s243 + $0x7] sm:$0x1] %v409
        %v411 = vld [vmem:[%s243 + $0xb] sm:$0x1]
        %v412 = vadd.f32 %v411, %v404
        %413 = vst [vmem:[%s243 + $0xb] sm:$0x1] %v412
        %p414 = scmp.lt.s32.totalorder %s24, 1
        %s415 = scalar_select %p414, %s24, 1
        %p416 = scmp.lt.s32.totalorder %s25, 0
        %s417 = scalar_select %p416, %s25, 0
        %s418 = smul.addr %s417, 2
        %s419 = smul.addr %s415, 2
        %s420 = sadd.s32 %s418, %s419
        %s421 = smul.addr %s420, 8
        %s422 = scalar_lea.vmem %s2, %s421
        // Predicated region
        $region41: #{tpu_custom_call.1} parent=27 // pred_check
          %p423 = pneg %p118
        $region42: #{tpu_custom_call.1} parent=27 // pred_check_branch
          %425 = sbr.rel (%p423) target = $region44
        $region43: #{tpu_custom_call.1} parent=27 // pred_region
          _
        $region44: #{tpu_custom_call.1} parent=27 // pred_fallthru
          _
      $region28: #{tpu_custom_call.1} parent=5 // pred_fallthru
        _
      %p426 = scmp.le.s32.totalorder 2, %s14
      // Predicated region
      $region45: #{tpu_custom_call.1} parent=5 // pred_check
        %p427 = pneg %p426
      $region46: #{tpu_custom_call.1} parent=5 // pred_check_branch
        %429 = sbr.rel (%p427) target = $region48
      $region47: #{tpu_custom_call.1} parent=5 // pred_region
        %s430 = ssub.s32 %s14, 2
        // Predicated region
        $region49: #{tpu_custom_call.1} parent=47 // pred_check
          %p431 = pneg %p124
        $region50: #{tpu_custom_call.1} parent=47 // pred_check_branch
          %433 = sbr.rel (%p431) target = $region52
        $region51: #{tpu_custom_call.1} parent=47 // pred_region
          %p434 = scmp.lt.s32.totalorder %s27, 1
          %s435 = scalar_select %p434, %s27, 1
          %p436 = scmp.lt.s32.totalorder %s28, 0
          %s437 = scalar_select %p436, %s28, 0
          %s438 = smul.addr %s437, 2
          %s439 = smul.addr %s435, 2
          %s440 = sadd.s32 %s438, %s439
          %s441 = smul.addr %s440, 8
          %s442 = scalar_lea.vmem %s2, %s441
        $region52: #{tpu_custom_call.1} parent=47 // pred_fallthru
          _
      $region48: #{tpu_custom_call.1} parent=5 // pred_fallthru
        _
    $region6: #{tpu_custom_call.1} parent=1 // loop_footer
      %s18 = sadd.s32 1, %s14
    $region7: #{tpu_custom_call.1} parent=1 // loop_footer_branch
      %13 = sbr.rel target = $region3
    $region8: #{tpu_custom_call.1} parent=1 // loop_exit
      _
    %443 = vsyncpa [#allocation3], 1
    %s444 = scalar_lea.sflag [#allocation3], 1
    %445 = vsyncpa %s444, 1
    %446 = vsyncpa [#allocation5], 1
    %s447 = scalar_lea.sflag [#allocation5], 1
    %448 = vsyncpa %s447, 1

</llo_original>
